<compile_context>
chip_gen: v5e
topology: v5e:2x2
jax: 0.10.0
libtpu: 0.0.40
codegen_flags: <defaults>
</compile_context>

<pallas_src>
import functools

import jax
import jax.numpy as jnp
from jax.experimental import pallas as pl
from jax.experimental.pallas import tpu as pltpu


# Lane-dense slab layout: last dim is a large multiple of 128; 256x1024 f32
# tiles are ~1 MiB each -> double-buffered in+out tiles fit comfortably under
# the scoped-VMEM defaults on v5e (16 MiB) and v6e/v7x (32 MiB).
LANE_W = 1024
TILE_ROWS = 256

_ON_TPU = jax.default_backend() == "tpu"


def _threshold_u32(p: float) -> int:
    """keep iff bits >= threshold  =>  P(keep) = 1 - p on 32-bit uniform bits."""
    t = int(round(p * float(1 << 32)))
    return min(max(t, 0), (1 << 32) - 1)


def _dropout_prng_kernel(seed_ref, x_ref, o_ref, *, threshold: int, scale: float):
    """TPU path: draw bits from the hardware PRNG, integer-threshold mask."""
    # Per-tile seed offset: re-seeding every grid step with the same scalar
    # would make all tiles draw identical (correlated) dropout masks.
    pltpu.prng_seed(seed_ref[0] + pl.program_id(0))
    bits = pltpu.prng_random_bits(x_ref.shape)
    if bits.dtype != jnp.uint32:
        bits = pltpu.bitcast(bits, jnp.uint32)
    keep = bits >= jnp.uint32(threshold)          # no uint->f32 convert chain
    x = x_ref[...]
    o_ref[...] = jnp.where(keep, x * scale, 0.0).astype(o_ref.dtype)


def _dropout_mask_kernel(x_ref, bits_ref, o_ref, *, threshold: int, scale: float):
    """Fallback path: random bits are streamed in as a tiled input."""
    keep = bits_ref[...] >= jnp.uint32(threshold)
    x = x_ref[...]
    o_ref[...] = jnp.where(keep, x * scale, 0.0).astype(o_ref.dtype)


def dropout(x: jax.Array, p: float = 0.5, training: bool = True,
            seed: int = 0) -> jax.Array:
    """Inverted-dropout forward on an arbitrarily shaped array."""
    if not training or p == 0.0 or x.size == 0:
        return x
    if p >= 1.0:
        return jnp.zeros_like(x)

    orig_shape = x.shape
    total = x.size
    flat = x.reshape(-1)

    # Pad (instead of asserting) so the flattened size tiles evenly into
    # (tile_rows, LANE_W) blocks; padding is sliced off afterwards.
    padded = pl.cdiv(total, LANE_W) * LANE_W
    rows = padded // LANE_W
    if rows <= TILE_ROWS:
        tile_rows = rows                      # single full-extent block
    else:
        tile_rows = TILE_ROWS
        padded = pl.cdiv(rows, TILE_ROWS) * TILE_ROWS * LANE_W
    if padded != total:
        flat = jnp.pad(flat, (0, padded - total))
    x2d = flat.reshape(padded // LANE_W, LANE_W)
    n_rows = x2d.shape[0]
    grid = (n_rows // tile_rows,)

    threshold = _threshold_u32(p)
    scale = 1.0 / (1.0 - p)

    if _ON_TPU:
        seed_arr = jnp.array([seed], dtype=jnp.int32)
        out2d = pl.pallas_call(
            functools.partial(_dropout_prng_kernel,
                              threshold=threshold, scale=scale),
            out_shape=jax.ShapeDtypeStruct(x2d.shape, x2d.dtype),
            grid_spec=pltpu.PrefetchScalarGridSpec(
                num_scalar_prefetch=1,
                grid=grid,
                in_specs=[pl.BlockSpec((tile_rows, LANE_W),
                                       lambda i, seed: (i, 0))],
                out_specs=pl.BlockSpec((tile_rows, LANE_W),
                                       lambda i, seed: (i, 0)),
            ),
            compiler_params=pltpu.CompilerParams(
                dimension_semantics=("parallel",),
                vmem_limit_bytes=32 * 1024 * 1024,
            ),
            # TODO(synk): expose input_output_aliases={1: 0} for callers that
            # allow in-place dropout to drop the extra output allocation.
        )(seed_arr, x2d)
    else:
        # Non-TPU / interpret fallback: TPU hardware-PRNG primitives have no
        # CPU lowering, so draw the bits in the wrapper with jax.random.
        key = jax.random.PRNGKey(seed)
        bits = jax.random.bits(key, shape=x2d.shape, dtype=jnp.uint32)
        block = pl.BlockSpec((tile_rows, LANE_W), lambda i: (i, 0))
        out2d = pl.pallas_call(
            functools.partial(_dropout_mask_kernel,
                              threshold=threshold, scale=scale),
            out_shape=jax.ShapeDtypeStruct(x2d.shape, x2d.dtype),
            grid=grid,
            in_specs=[block, block],
            out_specs=block,
        )(x2d, bits)

    return out2d.reshape(-1)[:total].reshape(orig_shape)


# ---- Minimal Module / Sequential mirroring the PyTorch spec ----------------

class Module:
    def __init__(self) -> None:
        self.training = True

    def __call__(self, x):
        return self.forward(x)

    def forward(self, x):
        raise NotImplementedError

    def _set_mode(self, training: bool) -> None:
        self.training = training
        for attr in vars(self).values():
            items = attr if isinstance(attr, (list, tuple)) else (attr,)
            for item in items:
                if isinstance(item, Module):
                    item._set_mode(training)

    def train(self) -> None:
        self._set_mode(True)

    def eval(self) -> None:
        self._set_mode(False)


class Dropout(Module):
    def __init__(self, p: float = 0.5, seed: int = 0) -> None:
        super().__init__()
        self.p = p
        self.seed = seed

    def forward(self, x):
        return dropout(x, p=self.p, training=self.training, seed=self.seed)


class Sequential(Module):
    def __init__(self, *layers: Module) -> None:
        super().__init__()
        self.layers = layers

    def forward(self, x):
        for layer in self.layers:
            x = layer(x)
        return x


if __name__ == "__main__":
    key = jax.random.PRNGKey(0)
    # Small NCHW input consistent with a typical use site.
    x = jax.random.normal(key, (2, 4, 16, 16), dtype=jnp.float32)

    p = 0.5
    # Sequential chaining exercised with two layers; the second (p=0) is the
    # identity so the output semantics stay easy to verify.
    model = Sequential(Dropout(p=p, seed=42), Dropout(p=0.0))

    # Training-mode forward (Pallas kernel hot path).
    y_train = jax.block_until_ready(model(x))

    # Eval-mode forward (identity).
    model.eval()
    y_eval = jax.block_until_ready(model(x))

    # Sanity checks on semantics.
    assert y_train.shape == x.shape and y_train.dtype == x.dtype
    scaled = x / (1.0 - p)
    ok = jnp.all(jnp.isclose(y_train, 0.0) |
                 jnp.isclose(y_train, scaled, rtol=1e-5, atol=1e-6))
    assert bool(ok), "dropout outputs must be 0 or x/(1-p)"
    drop_frac = float(jnp.mean((y_train == 0.0).astype(jnp.float32)))
    assert 0.3 < drop_frac < 0.7, f"unexpected drop fraction {drop_frac}"
    assert bool(jnp.all(y_eval == x)), "eval mode must be identity"

    print("KERNEL_OK")
</pallas_src>

<mosaic_0001>
module attributes {stable_mosaic.version = 11 : i64} {
  func.func @_dropout_mask_kernel(%arg0: i32, %arg1: memref<2x1024xf32, #tpu.memory_space<vmem>>, %arg2: memref<2x1024xi32, #tpu.memory_space<vmem>>, %arg3: memref<2x1024xf32, #tpu.memory_space<vmem>>) attributes {dimension_semantics = [#tpu.dimension_semantics<arbitrary>], iteration_bounds = array<i64: 1>, scalar_prefetch = 0 : i64, scratch_operands = 0 : i64, tpu.core_type = #tpu.core_type<tc>, window_params = [{transform_indices = @transform_0, window_bounds = array<i64: 2, 1024>}, {transform_indices = @transform_1, window_bounds = array<i64: 2, 1024>}, {transform_indices = @transform_2, window_bounds = array<i64: 2, 1024>}]} {
    %c0 = arith.constant 0 : index
    %c0_0 = arith.constant 0 : index
    %0 = vector.load %arg2[%c0, %c0_0] : memref<2x1024xi32, #tpu.memory_space<vmem>>, vector<2x1024xi32>
    %c-2147483648_i32 = arith.constant -2147483648 : i32
    %1 = vector.broadcast %c-2147483648_i32 : i32 to vector<2x1024xi32>
    %2 = arith.cmpi uge, %0, %1 : vector<2x1024xi32>
    %c0_1 = arith.constant 0 : index
    %c0_2 = arith.constant 0 : index
    %3 = vector.load %arg1[%c0_1, %c0_2] : memref<2x1024xf32, #tpu.memory_space<vmem>>, vector<2x1024xf32>
    %cst = arith.constant 2.000000e+00 : f32
    %4 = vector.broadcast %cst : f32 to vector<2x1024xf32>
    %5 = arith.mulf %3, %4 : vector<2x1024xf32>
    %cst_3 = arith.constant 0.000000e+00 : f32
    %6 = vector.broadcast %cst_3 : f32 to vector<2x1024xf32>
    %7 = arith.select %2, %5, %6 : vector<2x1024xi1>, vector<2x1024xf32>
    %c0_4 = arith.constant 0 : index
    %c0_5 = arith.constant 0 : index
    %8 = vector.load %arg3[%c0_4, %c0_5] : memref<2x1024xf32, #tpu.memory_space<vmem>>, vector<2x1024xf32>
    tpu.vector_store %arg3[%c0_4, %c0_5], %7 {strides = array<i32>} : memref<2x1024xf32, #tpu.memory_space<vmem>>, vector<2x1024xf32>,
    return
  }
  func.func @transform_0(%arg0: i32) -> (i32, i32) {
    %c0_i32 = arith.constant 0 : i32
    %c0_i32_0 = arith.constant 0 : i32
    return %arg0, %c0_i32 : i32, i32
  }
  func.func @transform_1(%arg0: i32) -> (i32, i32) {
    %c0_i32 = arith.constant 0 : i32
    %c0_i32_0 = arith.constant 0 : i32
    return %arg0, %c0_i32 : i32, i32
  }
  func.func @transform_2(%arg0: i32) -> (i32, i32) {
    %c0_i32 = arith.constant 0 : i32
    %c0_i32_0 = arith.constant 0 : i32
    return %arg0, %c0_i32 : i32, i32
  }
}

</mosaic_0001>

<llo_original>
// kernel: tpu_custom_call.1
$region0: #{tpu_custom_call.1}
  #allocation0 [shape = 'u32[]', space=smem, size = 0x4, offset = 0x4, fixed_abs, tag = 'smem constant byte address 0x4 - core index']
  #allocation1 [shape = 'u32[72,128]{1,0:T(1,128)}', space=vmem, size = 0x9000, scoped, tag = 'internal scratch']
  %s0 = inlined_call_operand.hbm [shape: f32[2,1024], index: 0, kind: input, shape index: {}]
  %s1 = inlined_call_operand.hbm [shape: u32[2,1024], index: 1, kind: input, shape index: {}]
  %s2 = inlined_call_operand.hbm [shape: f32[2,1024], index: 2, kind: output, shape index: {}]
  %s3 = sld [smem:[#allocation0]]
  $region26: #{tpu_custom_call.1} parent=0
    _
  %s5 = ssub.s32 1, %s3
  %s6 = scalar_select 0, %s5, %s3
  $region1: #{tpu_custom_call.1} parent=0
    #allocation2 [shape = 'u8[8192]{0}', space=vmem, size = 0x2000, scoped, tag = 'input window, operand 0, single buffered']
    #allocation3 [shape = 's32[1]{0}', space=sflag, size = 0x4, scoped, tag = 'scoped memory for tpu_custom_call.1']
    #allocation4 [shape = 's32[1]{0}', space=sflag, size = 0x4, scoped, tag = 'scoped memory for tpu_custom_call.1']
    #allocation5 [shape = 'u8[8192]{0}', space=vmem, size = 0x2000, scoped, tag = 'input window, operand 1, single buffered']
    #allocation6 [shape = 's32[1]{0}', space=sflag, size = 0x4, scoped, tag = 'scoped memory for tpu_custom_call.1']
    #allocation7 [shape = 'u8[8192]{0}', space=vmem, size = 0x2000, scoped, tag = 'output window, operand 0, single buffered']
    %7 = vsyncpa [#allocation3], 0
    %8 = vsyncpa [#allocation6], 0
    %9 = vsyncpa [#allocation4], 0
    // Predicated region
    $region2: #{tpu_custom_call.1} parent=1 // pred_check
      _
    $region3: #{tpu_custom_call.1} parent=1 // pred_check_branch
      %11 = sbr.rel (0) target = $region5
    $region4: #{tpu_custom_call.1} parent=1 // pred_region
      %13 = vsyncadd [#allocation3], 0
      %s15 = sshll.u32 %s0, 4
      %s16 = int_to_ptr.hbm [resolvable:$true] %s15
      %s17 = sshll.u32 [#allocation2], 4
      %s18 = int_to_ptr.vmem [resolvable:$true] %s17
      %20 = dma.hbm_to_vmem [thread:$0]  %s16, 256, %s18, [#allocation3]
    $region5: #{tpu_custom_call.1} parent=1 // pred_fallthru
      _
    // Predicated region
    $region6: #{tpu_custom_call.1} parent=1 // pred_check
      _
    $region7: #{tpu_custom_call.1} parent=1 // pred_check_branch
      %22 = sbr.rel (0) target = $region9
    $region8: #{tpu_custom_call.1} parent=1 // pred_region
      %24 = vsyncadd [#allocation6], 0
      %s26 = sshll.u32 %s1, 4
      %s27 = int_to_ptr.hbm [resolvable:$true] %s26
      %s28 = sshll.u32 [#allocation5], 4
      %s29 = int_to_ptr.vmem [resolvable:$true] %s28
      %31 = dma.hbm_to_vmem [thread:$0]  %s27, 256, %s29, [#allocation6]
    $region9: #{tpu_custom_call.1} parent=1 // pred_fallthru
      _
    // Predicated region
    $region10: #{tpu_custom_call.1} parent=1 // pred_check
      _
    $region11: #{tpu_custom_call.1} parent=1 // pred_check_branch
      %33 = sbr.rel (0) target = $region13
    $region12: #{tpu_custom_call.1} parent=1 // pred_region
      %35 = dma.done [#allocation3], 256
    $region13: #{tpu_custom_call.1} parent=1 // pred_fallthru
      _
    // Predicated region
    $region14: #{tpu_custom_call.1} parent=1 // pred_check
      _
    $region15: #{tpu_custom_call.1} parent=1 // pred_check_branch
      %37 = sbr.rel (0) target = $region17
    $region16: #{tpu_custom_call.1} parent=1 // pred_region
      %39 = dma.done [#allocation6], 256
    $region17: #{tpu_custom_call.1} parent=1 // pred_fallthru
      _
    %v40 = vld [vmem:[#allocation5] sm:$0xff]
    %v41 = vld [vmem:[#allocation5 + $0x8] sm:$0xff]
    %v42 = vadd.s32 %v40, 2147483648
    %vm44 = vcmp.ge.s32.totalorder %v42, 0
    %v45 = vadd.s32 %v41, 2147483648
    %vm47 = vcmp.ge.s32.totalorder %v45, 0
    %v48 = vld [vmem:[#allocation2] sm:$0xff]
    %v49 = vld [vmem:[#allocation2 + $0x8] sm:$0xff]
    %v50 = vmul.f32 %v48, 2.0
    %v51 = vmul.f32 %v49, 2.0
    %v52 = vsel %vm44, %v50, 0.0
    %v53 = vsel %vm47, %v51, 0.0
    %54 = vst [vmem:[#allocation7] sm:$0xff] %v52
    %55 = vst [vmem:[#allocation7 + $0x8] sm:$0xff] %v53
    // Predicated region
    $region18: #{tpu_custom_call.1} parent=1 // pred_check
      _
    $region19: #{tpu_custom_call.1} parent=1 // pred_check_branch
      %57 = sbr.rel (0) target = $region21
    $region20: #{tpu_custom_call.1} parent=1 // pred_region
      %59 = vsyncadd [#allocation4], 0
      %s61 = sshll.u32 [#allocation7], 4
      %s62 = int_to_ptr.vmem [resolvable:$true] %s61
      %s63 = sshll.u32 %s2, 4
      %s64 = int_to_ptr.hbm [resolvable:$true] %s63
      %66 = dma.vmem_to_hbm [thread:$0]  %s62, 256, %s64, [#allocation4]
    $region21: #{tpu_custom_call.1} parent=1 // pred_fallthru
      _
    // Predicated region
    $region22: #{tpu_custom_call.1} parent=1 // pred_check
      _
    $region23: #{tpu_custom_call.1} parent=1 // pred_check_branch
      %68 = sbr.rel (0) target = $region25
    $region24: #{tpu_custom_call.1} parent=1 // pred_region
      %70 = dma.done [#allocation4], 256
    $region25: #{tpu_custom_call.1} parent=1 // pred_fallthru
      _
    %71 = vsyncpa [#allocation3], 1
    %72 = vsyncpa [#allocation6], 1
    %73 = vsyncpa [#allocation4], 1

</llo_original>
